<compile_context>
chip_gen: v6e
topology: v6e:2x2x1
jax: 0.10.0
libtpu: 0.0.40
codegen_flags: <defaults>
</compile_context>

<pallas_src>
import math
from functools import partial

import jax
import jax.numpy as jnp
from jax import lax
from jax.experimental import pallas as pl
from jax.experimental.pallas import tpu as pltpu

NEG_SLOPE = 0.2
BN_EPS = 1e-5


def _lrelu(v):
    return jnp.where(v >= 0, v, NEG_SLOPE * v)


def _round_up(n, m):
    return ((n + m - 1) // m) * m


# ----------------------------------------------------------------------------
# Generation detection / per-generation tuning
# ----------------------------------------------------------------------------
def _tpu_generation():
    try:
        kind = jax.devices()[0].device_kind.lower()
    except Exception:
        return None
    if "tpu" not in kind:
        return None
    # device_kind examples: "TPU v4", "TPU v5 lite", "TPU v5e", "TPU v6e", "TPU7x"
    for gen in (7, 6, 5, 4, 3, 2):
        if (f"v{gen}" in kind) or (f"tpu{gen}" in kind):
            return gen
    return None


def _gen_config(gen):
    """Returns (block_b, vmem_limit_bytes, bf16_epilogue, mxu_layer4, min_grid_steps)."""
    if gen is not None and gen <= 5:
        # v5e: 128 MiB VMEM, no bf16 VALU, 128-wide MXU is the binding slot.
        return 8192, 96 * 1024 * 1024, False, False, 1
    if gen == 6:
        # v6e: 128 MiB VMEM, bf16 VALU, 256-wide MXU underfed -> offload onto it.
        return 8192, 96 * 1024 * 1024, True, True, 1
    if gen == 7:
        # v7x: 64 MiB VMEM, 2 TensorCores -> smaller tiles, keep >=4 grid steps.
        return 4096, 48 * 1024 * 1024, True, True, 4
    # Unknown generation: conservative defaults that fit every chip.
    return 4096, 48 * 1024 * 1024, True, True, 2


# ----------------------------------------------------------------------------
# Kernel
# ----------------------------------------------------------------------------
def _disc_kernel(x_ref, w1_ref, w2_ref, w3_ref, w4_ref, c_ref, o_ref,
                 *, bf16_epilogue, mxu_layer4):
    """Fused 4-layer (conv-as-matmul, folded BN/bias) + LeakyReLU + sigmoid.

    x_ref : (bB, 8)   f32   one batch tile (batch on sublanes here; layer 1
                            contracts both minor dims so no wrapper transpose)
    w1    : (128, 8)  bf16  BN-folded weights (VMEM-resident across the grid)
    w2    : (256,128) bf16
    w3    : (128,256) bf16
    w4    : (1,128) bf16 (MXU path)  or  (128,1) f32 (VPU/XLU path)
    c_ref : (513, 1)  f32   packed shifts: c1[0:128], c2[128:384], c3[384:512],
                            b4[512:513]
    o_ref : (1, bB)   f32   lane-dense sigmoid output
    """
    x = x_ref[...].astype(jnp.bfloat16)                                   # (bB, 8)

    c1 = c_ref[0:128, :]                                                  # (128,1)
    c2 = c_ref[128:384, :]                                                # (256,1)
    c3 = c_ref[384:512, :]                                                # (128,1)
    b4 = c_ref[512:513, :]                                                # (1,1)

    def epilogue(acc_f32, c_f32):
        if bf16_epilogue:
            # Packed-bf16 VALU: halves vreg traffic, feeds next matmul directly.
            v = acc_f32.astype(jnp.bfloat16) + c_f32.astype(jnp.bfloat16)
            return _lrelu(v)
        v = _lrelu(acc_f32 + c_f32)
        return v.astype(jnp.bfloat16)

    # Layer 1: 8 -> 128.  Contract x's last dim (a @ b^T), K=8, MXU.
    h = lax.dot_general(w1_ref[...], x,
                        dimension_numbers=(((1,), (1,)), ((), ())),
                        preferred_element_type=jnp.float32)               # (128, bB)
    h = epilogue(h, c1)

    # Layer 2: 128 -> 256
    h = jnp.dot(w2_ref[...], h, preferred_element_type=jnp.float32)
    h = epilogue(h, c2)                                                   # (256, bB)

    # Layer 3: 256 -> 128
    h = jnp.dot(w3_ref[...], h, preferred_element_type=jnp.float32)
    h = epilogue(h, c3)                                                   # (128, bB)

    # Layer 4: 128 -> 1
    if mxu_layer4:
        # M=1 matmul rides the MXU's slack (v6e/v7x).
        z = jnp.dot(w4_ref[...], h, preferred_element_type=jnp.float32) + b4
    else:
        # VPU multiply + sublane reduce (v5e: keep the MXU free).
        z = jnp.sum(h.astype(jnp.float32) * w4_ref[...], axis=0,
                    keepdims=True) + b4
    o_ref[...] = jax.nn.sigmoid(z).astype(o_ref.dtype)                    # (1, bB)


# ----------------------------------------------------------------------------
# Wrapper
# ----------------------------------------------------------------------------
def discriminator_forward(x, params, *, block_b=None):
    """x: (B, 8) f32 (or NCHW (B, 8, 1, 1)).  Returns (B, 1) f32."""
    if x.ndim == 4:
        assert x.shape[1:] == (8, 1, 1), "mlp path expects 1x1 feature maps"
        x = x.reshape(x.shape[0], 8)
    assert x.ndim == 2 and x.shape[1] == 8
    B = x.shape[0]

    gen = _tpu_generation()
    target, vmem_limit, bf16_epi, mxu_l4, min_steps = _gen_config(gen)
    if block_b is not None:
        target = block_b

    # Batch tile: multiple of 128 lanes, capped by the per-generation target,
    # clamped so megacore chips keep >= min_steps grid steps when B allows.
    bp0 = _round_up(max(B, 1), 128)
    bb = min(_round_up(target, 128), bp0)
    if min_steps > 1 and bp0 >= min_steps * 128:
        bb = min(bb, _round_up(-(-bp0 // min_steps), 128))
    bb = max(bb, 128)
    Bp = _round_up(B, bb)
    if Bp != B:
        x = jnp.pad(x, ((0, Bp - B), (0, 0)))

    w1, w2, w3 = params["w1"], params["w2"], params["w3"]
    w4 = params["w4_row"] if mxu_l4 else params["w4_col"]
    shifts = params["shifts"]

    def full_spec(arr):
        # Constant index_map -> block stays VMEM-resident across grid steps.
        return pl.BlockSpec(arr.shape, lambda i: (0,) * arr.ndim)

    kernel = partial(_disc_kernel, bf16_epilogue=bf16_epi, mxu_layer4=mxu_l4)

    out = pl.pallas_call(
        kernel,
        out_shape=jax.ShapeDtypeStruct((1, Bp), jnp.float32),
        grid=(Bp // bb,),
        in_specs=[
            pl.BlockSpec((bb, 8), lambda i: (i, 0)),        # activation stream
            full_spec(w1), full_spec(w2), full_spec(w3),
            full_spec(w4), full_spec(shifts),
        ],
        out_specs=pl.BlockSpec((1, bb), lambda i: (0, i)),  # lane-dense output
        compiler_params=pltpu.CompilerParams(
            dimension_semantics=("parallel",),              # megacore sharding
            vmem_limit_bytes=vmem_limit),
    )(x, w1, w2, w3, w4, shifts)

    return out[0, :B].reshape(B, 1)


# ----------------------------------------------------------------------------
# Deterministic parameter construction (mirrors the PyTorch module's shapes).
# ----------------------------------------------------------------------------
def _conv_init(key, co, ci, kh, kw):
    kw_, kb_ = jax.random.split(key)
    fan_in = ci * kh * kw
    bound = 1.0 / math.sqrt(fan_in)
    w = jax.random.uniform(kw_, (co, ci, kh, kw), jnp.float32, -bound, bound)
    b = jax.random.uniform(kb_, (co,), jnp.float32, -bound, bound)
    return w, b


def _bn_init(key, c):
    k1, k2, k3, k4 = jax.random.split(key, 4)
    gamma = jax.random.uniform(k1, (c,), jnp.float32, 0.5, 1.5)
    beta = 0.1 * jax.random.normal(k2, (c,), jnp.float32)
    mean = 0.1 * jax.random.normal(k3, (c,), jnp.float32)
    var = jax.random.uniform(k4, (c,), jnp.float32, 0.5, 1.5)
    return gamma, beta, mean, var


def init_raw_params(key):
    k1, k2, k3, k4, k5, k6, k7 = jax.random.split(key, 7)
    c1_w, c1_b = _conv_init(k1, 128, 8, 2, 2)     # Conv2d(8,128,k2,s2,p1)
    c2_w, c2_b = _conv_init(k2, 256, 128, 2, 2)   # Conv2d(128,256,k2,s2,p1)
    c3_w, c3_b = _conv_init(k3, 128, 256, 1, 1)   # Conv2d(256,128,k1)
    c4_w, c4_b = _conv_init(k4, 1, 128, 1, 1)     # Conv2d(128,1,k1)
    bn1 = _bn_init(k5, 128)
    bn2 = _bn_init(k6, 256)
    bn3 = _bn_init(k7, 128)
    return (c1_w, c1_b, c2_w, c2_b, c3_w, c3_b, c4_w, c4_b, bn1, bn2, bn3)


def _fold(conv_w_tap, conv_b, gamma, beta, mean, var):
    """Fold conv bias + eval-mode BN into (bf16 weight, f32 shift)."""
    s = gamma / jnp.sqrt(var + BN_EPS)                       # (Cout,)
    w = (conv_w_tap * s[:, None]).astype(jnp.bfloat16)       # (Cout, Cin)
    c = (conv_b * s + beta - mean * s)[:, None]              # (Cout, 1)
    return w, c.astype(jnp.float32)


def fold_params(raw):
    (c1_w, c1_b, c2_w, c2_b, c3_w, c3_b, c4_w, c4_b, bn1, bn2, bn3) = raw
    # Only tap (1,1) of the 2x2/s2/p1 conv touches the padded 1x1 map.
    w1, s1 = _fold(c1_w[:, :, 1, 1], c1_b, *bn1)              # (128, 8)
    w2, s2 = _fold(c2_w[:, :, 1, 1], c2_b, *bn2)              # (256, 128)
    w3, s3 = _fold(c3_w[:, :, 0, 0], c3_b, *bn3)              # (128, 256)
    w4_row = c4_w[:, :, 0, 0].astype(jnp.bfloat16)            # (1, 128)  MXU path
    w4_col = jnp.transpose(c4_w[:, :, 0, 0]).astype(jnp.float32)   # (128,1) VPU path
    b4 = c4_b.reshape(1, 1).astype(jnp.float32)               # (1, 1)
    shifts = jnp.concatenate([s1, s2, s3, b4], axis=0)        # (513, 1) f32
    return dict(w1=w1, w2=w2, w3=w3, w4_row=w4_row, w4_col=w4_col, shifts=shifts)


# ----------------------------------------------------------------------------
# References
# ----------------------------------------------------------------------------
def reference_forward_folded(x, params, *, bf16_epilogue, mxu_layer4):
    """Pure-JAX mirror of the exact kernel math (folded bf16 weights)."""
    w1, w2, w3 = params["w1"], params["w2"], params["w3"]
    shifts = params["shifts"]
    c1 = shifts[0:128]
    c2 = shifts[128:384]
    c3 = shifts[384:512]
    b4 = shifts[512:513]

    def epi(acc, c):
        if bf16_epilogue:
            return _lrelu(acc.astype(jnp.bfloat16) + c.astype(jnp.bfloat16))
        return _lrelu(acc + c).astype(jnp.bfloat16)

    xb = x.astype(jnp.bfloat16)
    h = lax.dot_general(w1, xb, dimension_numbers=(((1,), (1,)), ((), ())),
                        preferred_element_type=jnp.float32)
    h = epi(h, c1)
    h = jnp.dot(w2, h, preferred_element_type=jnp.float32)
    h = epi(h, c2)
    h = jnp.dot(w3, h, preferred_element_type=jnp.float32)
    h = epi(h, c3)
    if mxu_layer4:
        z = jnp.dot(params["w4_row"], h, preferred_element_type=jnp.float32) + b4
    else:
        z = jnp.sum(h.astype(jnp.float32) * params["w4_col"], axis=0,
                    keepdims=True) + b4
    return jnp.transpose(jax.nn.sigmoid(z))                   # (B, 1)


def reference_forward_raw(x, raw):
    """Full-precision f32 reference of the PyTorch eval semantics."""
    (c1_w, c1_b, c2_w, c2_b, c3_w, c3_b, c4_w, c4_b, bn1, bn2, bn3) = raw

    def bn(h, p):
        gamma, beta, mean, var = p
        return (h - mean) / jnp.sqrt(var + BN_EPS) * gamma + beta

    h = x @ c1_w[:, :, 1, 1].T + c1_b
    h = _lrelu(bn(h, bn1))
    h = h @ c2_w[:, :, 1, 1].T + c2_b
    h = _lrelu(bn(h, bn2))
    h = h @ c3_w[:, :, 0, 0].T + c3_b
    h = _lrelu(bn(h, bn3))
    h = h @ c4_w[:, :, 0, 0].T + c4_b
    return jax.nn.sigmoid(h)


if __name__ == "__main__":
    key = jax.random.PRNGKey(0)
    kx, kp = jax.random.split(key)

    B = 16
    x = jax.random.normal(kx, (B, 8), jnp.float32)  # a9a-style: (B,8) -> (B,8,1,1)

    raw = init_raw_params(kp)
    params = fold_params(raw)

    out = jax.block_until_ready(discriminator_forward(x, params))
    assert out.shape == (B, 1), out.shape

    gen = _tpu_generation()
    _, _, bf16_epi, mxu_l4, _ = _gen_config(gen)
    ref_same = reference_forward_folded(x, params,
                                        bf16_epilogue=bf16_epi, mxu_layer4=mxu_l4)
    ref_full = reference_forward_raw(x, raw)           # f32 PyTorch semantics

    err_same = float(jnp.max(jnp.abs(out - ref_same)))
    err_full = float(jnp.max(jnp.abs(out - ref_full)))
    assert err_same < 5e-3, err_same
    assert err_full < 3e-2, err_full
    print("KERNEL_OK")
</pallas_src>

<mosaic_0001>
module attributes {stable_mosaic.version = 11 : i64} {
  func.func @_disc_kernel(%arg0: i32, %arg1: memref<128x8xf32, #tpu.memory_space<vmem>>, %arg2: memref<128x8xbf16, #tpu.memory_space<vmem>>, %arg3: memref<256x128xbf16, #tpu.memory_space<vmem>>, %arg4: memref<128x256xbf16, #tpu.memory_space<vmem>>, %arg5: memref<1x128xbf16, #tpu.memory_space<vmem>>, %arg6: memref<513x1xf32, #tpu.memory_space<vmem>>, %arg7: memref<1x128xf32, #tpu.memory_space<vmem>>) attributes {dimension_semantics = [#tpu.dimension_semantics<parallel>], iteration_bounds = array<i64: 1>, scalar_prefetch = 0 : i64, scratch_operands = 0 : i64, tpu.core_type = #tpu.core_type<tc>, window_params = [{transform_indices = @transform_0, window_bounds = array<i64: 128, 8>}, {pipeline_mode = #tpu.pipeline_mode<synchronous>, transform_indices = @transform_1, window_bounds = array<i64: 128, 8>}, {pipeline_mode = #tpu.pipeline_mode<synchronous>, transform_indices = @transform_2, window_bounds = array<i64: 256, 128>}, {pipeline_mode = #tpu.pipeline_mode<synchronous>, transform_indices = @transform_3, window_bounds = array<i64: 128, 256>}, {pipeline_mode = #tpu.pipeline_mode<synchronous>, transform_indices = @transform_4, window_bounds = array<i64: 1, 128>}, {pipeline_mode = #tpu.pipeline_mode<synchronous>, transform_indices = @transform_5, window_bounds = array<i64: 513, 1>}, {transform_indices = @transform_6, window_bounds = array<i64: 1, 128>}]} {
    %c0 = arith.constant 0 : index
    %c0_0 = arith.constant 0 : index
    %0 = vector.load %arg1[%c0, %c0_0] : memref<128x8xf32, #tpu.memory_space<vmem>>, vector<128x8xf32>
    %1 = arith.truncf %0 : vector<128x8xf32> to vector<128x8xbf16>
    %c0_1 = arith.constant 0 : index
    %c0_2 = arith.constant 0 : index
    %2 = vector.load %arg6[%c0_1, %c0_2] : memref<513x1xf32, #tpu.memory_space<vmem>>, vector<128x1xf32>
    %c128 = arith.constant 128 : index
    %c0_3 = arith.constant 0 : index
    %3 = vector.load %arg6[%c128, %c0_3] : memref<513x1xf32, #tpu.memory_space<vmem>>, vector<256x1xf32>
    %c384 = arith.constant 384 : index
    %c0_4 = arith.constant 0 : index
    %4 = vector.load %arg6[%c384, %c0_4] : memref<513x1xf32, #tpu.memory_space<vmem>>, vector<128x1xf32>
    %c512 = arith.constant 512 : index
    %c0_5 = arith.constant 0 : index
    %5 = vector.load %arg6[%c512, %c0_5] : memref<513x1xf32, #tpu.memory_space<vmem>>, vector<1x1xf32>
    %c0_6 = arith.constant 0 : index
    %c0_7 = arith.constant 0 : index
    %6 = vector.load %arg2[%c0_6, %c0_7] : memref<128x8xbf16, #tpu.memory_space<vmem>>, vector<128x8xbf16>
    %cst = arith.constant dense<0.000000e+00> : vector<128x128xf32>
    %7 = tpu.matmul %6, %1, %cst {dimension_numbers = #tpu.dot_dimension_numbers<[1], [1], [0], [0], [0, 0, 1, 0], [], []>} : vector<128x8xbf16>, vector<128x8xbf16>, vector<128x128xf32> -> vector<128x128xf32>
    %8 = arith.truncf %7 : vector<128x128xf32> to vector<128x128xbf16>
    %9 = arith.truncf %2 : vector<128x1xf32> to vector<128x1xbf16>
    %10 = vector.broadcast %9 : vector<128x1xbf16> to vector<128x128xbf16>
    %11 = arith.addf %8, %10 : vector<128x128xbf16>
    %cst_8 = arith.constant 0.000000e+00 : bf16
    %12 = vector.broadcast %cst_8 : bf16 to vector<128x128xbf16>
    %13 = arith.cmpf oge, %11, %12 : vector<128x128xbf16>
    %cst_9 = arith.constant 2.001950e-01 : bf16
    %14 = vector.broadcast %cst_9 : bf16 to vector<128x128xbf16>
    %15 = arith.mulf %14, %11 : vector<128x128xbf16>
    %16 = arith.select %13, %11, %15 : vector<128x128xi1>, vector<128x128xbf16>
    %c0_10 = arith.constant 0 : index
    %c0_11 = arith.constant 0 : index
    %17 = vector.load %arg3[%c0_10, %c0_11] : memref<256x128xbf16, #tpu.memory_space<vmem>>, vector<256x128xbf16>
    %cst_12 = arith.constant dense<0.000000e+00> : vector<256x128xf32>
    %18 = tpu.matmul %17, %16, %cst_12 {dimension_numbers = #tpu.dot_dimension_numbers<[1], [0], [0], [1], [0, 0, 1, 1], [], []>} : vector<256x128xbf16>, vector<128x128xbf16>, vector<256x128xf32> -> vector<256x128xf32>
    %19 = arith.truncf %18 : vector<256x128xf32> to vector<256x128xbf16>
    %20 = arith.truncf %3 : vector<256x1xf32> to vector<256x1xbf16>
    %21 = vector.broadcast %20 : vector<256x1xbf16> to vector<256x128xbf16>
    %22 = arith.addf %19, %21 : vector<256x128xbf16>
    %cst_13 = arith.constant 0.000000e+00 : bf16
    %23 = vector.broadcast %cst_13 : bf16 to vector<256x128xbf16>
    %24 = arith.cmpf oge, %22, %23 : vector<256x128xbf16>
    %cst_14 = arith.constant 2.001950e-01 : bf16
    %25 = vector.broadcast %cst_14 : bf16 to vector<256x128xbf16>
    %26 = arith.mulf %25, %22 : vector<256x128xbf16>
    %27 = arith.select %24, %22, %26 : vector<256x128xi1>, vector<256x128xbf16>
    %c0_15 = arith.constant 0 : index
    %c0_16 = arith.constant 0 : index
    %28 = vector.load %arg4[%c0_15, %c0_16] : memref<128x256xbf16, #tpu.memory_space<vmem>>, vector<128x256xbf16>
    %cst_17 = arith.constant dense<0.000000e+00> : vector<128x128xf32>
    %29 = tpu.matmul %28, %27, %cst_17 {dimension_numbers = #tpu.dot_dimension_numbers<[1], [0], [0], [1], [0, 0, 1, 1], [], []>} : vector<128x256xbf16>, vector<256x128xbf16>, vector<128x128xf32> -> vector<128x128xf32>
    %30 = arith.truncf %29 : vector<128x128xf32> to vector<128x128xbf16>
    %31 = arith.truncf %4 : vector<128x1xf32> to vector<128x1xbf16>
    %32 = vector.broadcast %31 : vector<128x1xbf16> to vector<128x128xbf16>
    %33 = arith.addf %30, %32 : vector<128x128xbf16>
    %cst_18 = arith.constant 0.000000e+00 : bf16
    %34 = vector.broadcast %cst_18 : bf16 to vector<128x128xbf16>
    %35 = arith.cmpf oge, %33, %34 : vector<128x128xbf16>
    %cst_19 = arith.constant 2.001950e-01 : bf16
    %36 = vector.broadcast %cst_19 : bf16 to vector<128x128xbf16>
    %37 = arith.mulf %36, %33 : vector<128x128xbf16>
    %38 = arith.select %35, %33, %37 : vector<128x128xi1>, vector<128x128xbf16>
    %c0_20 = arith.constant 0 : index
    %c0_21 = arith.constant 0 : index
    %39 = vector.load %arg5[%c0_20, %c0_21] : memref<1x128xbf16, #tpu.memory_space<vmem>>, vector<1x128xbf16>
    %cst_22 = arith.constant dense<0.000000e+00> : vector<1x128xf32>
    %40 = tpu.matmul %39, %38, %cst_22 {dimension_numbers = #tpu.dot_dimension_numbers<[1], [0], [0], [1], [0, 0, 1, 1], [], []>} : vector<1x128xbf16>, vector<128x128xbf16>, vector<1x128xf32> -> vector<1x128xf32>
    %41 = vector.broadcast %5 : vector<1x1xf32> to vector<1x128xf32>
    %42 = arith.addf %40, %41 : vector<1x128xf32>
    %43 = arith.negf %42 : vector<1x128xf32>
    %44 = math.exp %43 : vector<1x128xf32>
    %cst_23 = arith.constant 1.000000e+00 : f32
    %45 = vector.broadcast %cst_23 : f32 to vector<1x128xf32>
    %46 = arith.addf %45, %44 : vector<1x128xf32>
    %47 = arith.divf %45, %46 : vector<1x128xf32>
    %c0_24 = arith.constant 0 : index
    %c0_25 = arith.constant 0 : index
    %48 = vector.load %arg7[%c0_24, %c0_25] : memref<1x128xf32, #tpu.memory_space<vmem>>, vector<1x128xf32>
    tpu.vector_store %arg7[%c0_24, %c0_25], %47 {strides = array<i32>} : memref<1x128xf32, #tpu.memory_space<vmem>>, vector<1x128xf32>,
    return
  }
  func.func @transform_0(%arg0: i32) -> (i32, i32) {
    %c0_i32 = arith.constant 0 : i32
    %c0_i32_0 = arith.constant 0 : i32
    return %arg0, %c0_i32 : i32, i32
  }
  func.func @transform_1(%arg0: i32) -> (i32, i32) {
    %c0_i32 = arith.constant 0 : i32
    %c0_i32_0 = arith.constant 0 : i32
    %c0_i32_1 = arith.constant 0 : i32
    return %c0_i32, %c0_i32_0 : i32, i32
  }
  func.func @transform_2(%arg0: i32) -> (i32, i32) {
    %c0_i32 = arith.constant 0 : i32
    %c0_i32_0 = arith.constant 0 : i32
    %c0_i32_1 = arith.constant 0 : i32
    return %c0_i32, %c0_i32_0 : i32, i32
  }
  func.func @transform_3(%arg0: i32) -> (i32, i32) {
    %c0_i32 = arith.constant 0 : i32
    %c0_i32_0 = arith.constant 0 : i32
    %c0_i32_1 = arith.constant 0 : i32
    return %c0_i32, %c0_i32_0 : i32, i32
  }
  func.func @transform_4(%arg0: i32) -> (i32, i32) {
    %c0_i32 = arith.constant 0 : i32
    %c0_i32_0 = arith.constant 0 : i32
    %c0_i32_1 = arith.constant 0 : i32
    return %c0_i32, %c0_i32_0 : i32, i32
  }
  func.func @transform_5(%arg0: i32) -> (i32, i32) {
    %c0_i32 = arith.constant 0 : i32
    %c0_i32_0 = arith.constant 0 : i32
    %c0_i32_1 = arith.constant 0 : i32
    return %c0_i32, %c0_i32_0 : i32, i32
  }
  func.func @transform_6(%arg0: i32) -> (i32, i32) {
    %c0_i32 = arith.constant 0 : i32
    %c0_i32_0 = arith.constant 0 : i32
    return %c0_i32, %arg0 : i32, i32
  }
}

</mosaic_0001>

<llo_original>
// kernel: tpu_custom_call.1
$region0: #{tpu_custom_call.1}
  #allocation0 [shape = 'u32[]', space=smem, size = 0x4, offset = 0x4, fixed_abs, tag = 'smem constant byte address 0x4 - core index']
  #allocation1 [shape = 'u32[144,128]{1,0:T(1,128)}', space=vmem, size = 0x12000, scoped, tag = 'internal scratch']
  %s0 = inlined_call_operand.vmem [shape: f32[128,8], index: 0, kind: input, shape index: {}]
  %s1 = inlined_call_operand.vmem [shape: bf16[128,8], index: 1, kind: input, shape index: {}]
  %s2 = inlined_call_operand.vmem [shape: bf16[256,128], index: 2, kind: input, shape index: {}]
  %s3 = inlined_call_operand.vmem [shape: bf16[128,256], index: 3, kind: input, shape index: {}]
  %s4 = inlined_call_operand.vmem [shape: bf16[1,128], index: 4, kind: input, shape index: {}]
  %s5 = inlined_call_operand.vmem [shape: f32[513,1], index: 5, kind: input, shape index: {}]
  %s6 = inlined_call_operand.hbm [shape: f32[1,128], index: 6, kind: output, shape index: {}]
  %s7 = sld [smem:[#allocation0]]
  $region34: #{tpu_custom_call.1} parent=0
    _
  %s9 = ssub.s32 1, %s7
  %s10 = scalar_select 0, %s9, %s7
  $region1: #{tpu_custom_call.1} parent=0
    #allocation2 [shape = 'u8[512]{0}', space=vmem, size = 0x400, scoped, tag = 'output window, operand 0, single buffered']
    #allocation3 [shape = 's32[1]{0}', space=sflag, size = 0x4, scoped, tag = 'scoped memory for tpu_custom_call.1']
    %11 = vsyncpa [#allocation3], 0
    // Predicated region
    $region2: #{tpu_custom_call.1} parent=1 // pred_check
      _
    $region3: #{tpu_custom_call.1} parent=1 // pred_check_branch
      %13 = sbr.rel (0) target = $region5
    $region4: #{tpu_custom_call.1} parent=1 // pred_region
      _
    $region5: #{tpu_custom_call.1} parent=1 // pred_fallthru
      _
    // Predicated region
    $region6: #{tpu_custom_call.1} parent=1 // pred_check
      _
    $region7: #{tpu_custom_call.1} parent=1 // pred_check_branch
      %15 = sbr.rel (0) target = $region9
    $region8: #{tpu_custom_call.1} parent=1 // pred_region
      _
    $region9: #{tpu_custom_call.1} parent=1 // pred_fallthru
      _
    // Predicated region
    $region10: #{tpu_custom_call.1} parent=1 // pred_check
      _
    $region11: #{tpu_custom_call.1} parent=1 // pred_check_branch
      %17 = sbr.rel (0) target = $region13
    $region12: #{tpu_custom_call.1} parent=1 // pred_region
      _
    $region13: #{tpu_custom_call.1} parent=1 // pred_fallthru
      _
    // Predicated region
    $region14: #{tpu_custom_call.1} parent=1 // pred_check
      _
    $region15: #{tpu_custom_call.1} parent=1 // pred_check_branch
      %19 = sbr.rel (0) target = $region17
    $region16: #{tpu_custom_call.1} parent=1 // pred_region
      _
    $region17: #{tpu_custom_call.1} parent=1 // pred_fallthru
      _
    // Predicated region
    $region18: #{tpu_custom_call.1} parent=1 // pred_check
      _
    $region19: #{tpu_custom_call.1} parent=1 // pred_check_branch
      %21 = sbr.rel (0) target = $region21
    $region20: #{tpu_custom_call.1} parent=1 // pred_region
      _
    $region21: #{tpu_custom_call.1} parent=1 // pred_fallthru
      _
    // Predicated region
    $region22: #{tpu_custom_call.1} parent=1 // pred_check
      _
    $region23: #{tpu_custom_call.1} parent=1 // pred_check_branch
      %23 = sbr.rel (0) target = $region25
    $region24: #{tpu_custom_call.1} parent=1 // pred_region
      _
    $region25: #{tpu_custom_call.1} parent=1 // pred_fallthru
      _
    %v26 = vld [vmem:[%s0] sm:$0xff]
    %v27 = vld [vmem:[%s0 + $0x8] sm:$0xff]
    %v28 = vld [vmem:[%s0 + $0x10] sm:$0xff]
    %v29 = vld [vmem:[%s0 + $0x18] sm:$0xff]
    %v30 = vld [vmem:[%s0 + $0x20] sm:$0xff]
    %v31 = vld [vmem:[%s0 + $0x28] sm:$0xff]
    %v32 = vld [vmem:[%s0 + $0x30] sm:$0xff]
    %v33 = vld [vmem:[%s0 + $0x38] sm:$0xff]
    %v34 = vld [vmem:[%s0 + $0x40] sm:$0xff]
    %v35 = vld [vmem:[%s0 + $0x48] sm:$0xff]
    %v36 = vld [vmem:[%s0 + $0x50] sm:$0xff]
    %v37 = vld [vmem:[%s0 + $0x58] sm:$0xff]
    %v38 = vld [vmem:[%s0 + $0x60] sm:$0xff]
    %v39 = vld [vmem:[%s0 + $0x68] sm:$0xff]
    %v40 = vld [vmem:[%s0 + $0x70] sm:$0xff]
    %v41 = vld [vmem:[%s0 + $0x78] sm:$0xff]
    %v42 = vpack.c.bf16 %v27, %v26
    %v43 = vpack.c.bf16 %v29, %v28
    %v44 = vpack.c.bf16 %v31, %v30
    %v45 = vpack.c.bf16 %v33, %v32
    %v46 = vpack.c.bf16 %v35, %v34
    %v47 = vpack.c.bf16 %v37, %v36
    %v48 = vpack.c.bf16 %v39, %v38
    %v49 = vpack.c.bf16 %v41, %v40
    %v50 = vld [vmem:[%s5] sm:$0xff]
    %v51 = vld [vmem:[%s5 + $0x8] sm:$0xff]
    %v52 = vld [vmem:[%s5 + $0x10] sm:$0xff]
    %v53 = vld [vmem:[%s5 + $0x18] sm:$0xff]
    %v54 = vld [vmem:[%s5 + $0x20] sm:$0xff]
    %v55 = vld [vmem:[%s5 + $0x28] sm:$0xff]
    %v56 = vld [vmem:[%s5 + $0x30] sm:$0xff]
    %v57 = vld [vmem:[%s5 + $0x38] sm:$0xff]
    %v58 = vld [vmem:[%s5 + $0x40] sm:$0xff]
    %v59 = vld [vmem:[%s5 + $0x48] sm:$0xff]
    %v60 = vld [vmem:[%s5 + $0x50] sm:$0xff]
    %v61 = vld [vmem:[%s5 + $0x58] sm:$0xff]
    %v62 = vld [vmem:[%s5 + $0x60] sm:$0xff]
    %v63 = vld [vmem:[%s5 + $0x68] sm:$0xff]
    %v64 = vld [vmem:[%s5 + $0x70] sm:$0xff]
    %v65 = vld [vmem:[%s5 + $0x78] sm:$0xff]
    %v66 = vld [vmem:[%s5 + $0x80] sm:$0xff]
    %v67 = vld [vmem:[%s5 + $0x88] sm:$0xff]
    %v68 = vld [vmem:[%s5 + $0x90] sm:$0xff]
    %v69 = vld [vmem:[%s5 + $0x98] sm:$0xff]
    %v70 = vld [vmem:[%s5 + $0xa0] sm:$0xff]
    %v71 = vld [vmem:[%s5 + $0xa8] sm:$0xff]
    %v72 = vld [vmem:[%s5 + $0xb0] sm:$0xff]
    %v73 = vld [vmem:[%s5 + $0xb8] sm:$0xff]
    %v74 = vld [vmem:[%s5 + $0xc0] sm:$0xff]
    %v75 = vld [vmem:[%s5 + $0xc8] sm:$0xff]
    %v76 = vld [vmem:[%s5 + $0xd0] sm:$0xff]
    %v77 = vld [vmem:[%s5 + $0xd8] sm:$0xff]
    %v78 = vld [vmem:[%s5 + $0xe0] sm:$0xff]
    %v79 = vld [vmem:[%s5 + $0xe8] sm:$0xff]
    %v80 = vld [vmem:[%s5 + $0xf0] sm:$0xff]
    %v81 = vld [vmem:[%s5 + $0xf8] sm:$0xff]
    %v82 = vld [vmem:[%s5 + $0x100] sm:$0xff]
    %v83 = vld [vmem:[%s5 + $0x108] sm:$0xff]
    %v84 = vld [vmem:[%s5 + $0x110] sm:$0xff]
    %v85 = vld [vmem:[%s5 + $0x118] sm:$0xff]
    %v86 = vld [vmem:[%s5 + $0x120] sm:$0xff]
    %v87 = vld [vmem:[%s5 + $0x128] sm:$0xff]
    %v88 = vld [vmem:[%s5 + $0x130] sm:$0xff]
    %v89 = vld [vmem:[%s5 + $0x138] sm:$0xff]
    %v90 = vld [vmem:[%s5 + $0x140] sm:$0xff]
    %v91 = vld [vmem:[%s5 + $0x148] sm:$0xff]
    %v92 = vld [vmem:[%s5 + $0x150] sm:$0xff]
    %v93 = vld [vmem:[%s5 + $0x158] sm:$0xff]
    %v94 = vld [vmem:[%s5 + $0x160] sm:$0xff]
    %v95 = vld [vmem:[%s5 + $0x168] sm:$0xff]
    %v96 = vld [vmem:[%s5 + $0x170] sm:$0xff]
    %v97 = vld [vmem:[%s5 + $0x178] sm:$0xff]
    %v98 = vld [vmem:[%s5 + $0x180] sm:$0xff]
    %v99 = vld [vmem:[%s5 + $0x188] sm:$0xff]
    %v100 = vld [vmem:[%s5 + $0x190] sm:$0xff]
    %v101 = vld [vmem:[%s5 + $0x198] sm:$0xff]
    %v102 = vld [vmem:[%s5 + $0x1a0] sm:$0xff]
    %v103 = vld [vmem:[%s5 + $0x1a8] sm:$0xff]
    %v104 = vld [vmem:[%s5 + $0x1b0] sm:$0xff]
    %v105 = vld [vmem:[%s5 + $0x1b8] sm:$0xff]
    %v106 = vld [vmem:[%s5 + $0x1c0] sm:$0xff]
    %v107 = vld [vmem:[%s5 + $0x1c8] sm:$0xff]
    %v108 = vld [vmem:[%s5 + $0x1d0] sm:$0xff]
    %v109 = vld [vmem:[%s5 + $0x1d8] sm:$0xff]
    %v110 = vld [vmem:[%s5 + $0x1e0] sm:$0xff]
    %v111 = vld [vmem:[%s5 + $0x1e8] sm:$0xff]
    %v112 = vld [vmem:[%s5 + $0x1f0] sm:$0xff]
    %v113 = vld [vmem:[%s5 + $0x1f8] sm:$0xff]
    %v114 = vld [vmem:[%s5 + $0x200] sm:$0x1]
    %v115 = vld [vmem:[%s1] sm:$0xf]
    %v116 = vld [vmem:[%s1 + $0x4] sm:$0xf]
    %v117 = vld [vmem:[%s1 + $0x8] sm:$0xf]
    %v118 = vld [vmem:[%s1 + $0xc] sm:$0xf]
    %v119 = vld [vmem:[%s1 + $0x10] sm:$0xf]
    %v120 = vld [vmem:[%s1 + $0x14] sm:$0xf]
    %v121 = vld [vmem:[%s1 + $0x18] sm:$0xf]
    %v122 = vld [vmem:[%s1 + $0x1c] sm:$0xf]
    %v123 = vld [vmem:[%s1 + $0x20] sm:$0xf]
    %v124 = vld [vmem:[%s1 + $0x24] sm:$0xf]
    %v125 = vld [vmem:[%s1 + $0x28] sm:$0xf]
    %v126 = vld [vmem:[%s1 + $0x2c] sm:$0xf]
    %v127 = vld [vmem:[%s1 + $0x30] sm:$0xf]
    %v128 = vld [vmem:[%s1 + $0x34] sm:$0xf]
    %v129 = vld [vmem:[%s1 + $0x38] sm:$0xf]
    %v130 = vld [vmem:[%s1 + $0x3c] sm:$0xf]
    %v147 = vunpack.c.l.b16 %v115
    %v148 = vunpack.c.l.b16 %v116
    %v149 = vunpack.c.l.b16 %v117
    %v150 = vunpack.c.l.b16 %v118
    %v151 = vunpack.c.l.b16 %v119
    %v152 = vunpack.c.l.b16 %v120
    %v153 = vunpack.c.l.b16 %v121
    %v154 = vunpack.c.l.b16 %v122
    %v155 = vunpack.c.l.b16 %v123
    %v156 = vunpack.c.l.b16 %v124
    %v157 = vunpack.c.l.b16 %v125
    %v158 = vunpack.c.l.b16 %v126
    %v159 = vunpack.c.l.b16 %v127
    %v160 = vunpack.c.l.b16 %v128
    %v161 = vunpack.c.l.b16 %v129
    %v162 = vunpack.c.l.b16 %v130
    %v163 = vpack.c.b16 %v148, %v147
    %v164 = vpack.c.b16 %v150, %v149
    %v165 = vpack.c.b16 %v152, %v151
    %v166 = vpack.c.b16 %v154, %v153
    %v167 = vpack.c.b16 %v156, %v155
    %v168 = vpack.c.b16 %v158, %v157
    %v169 = vpack.c.b16 %v160, %v159
    %v170 = vpack.c.b16 %v162, %v161
    %vm171 = vcmask 64512
    %v173 = vsel %vm171, %v163, 0
    %v176 = vsel %vm171, %v164, 0
    %v179 = vsel %vm171, %v165, 0
    %v182 = vsel %vm171, %v166, 0
    %v185 = vsel %vm171, %v167, 0
    %v188 = vsel %vm171, %v168, 0
    %v191 = vsel %vm171, %v169, 0
    %v194 = vsel %vm171, %v170, 0
    %v197 = vsel %vm171, %v42, 0
    %v200 = vsel %vm171, %v43, 0
    %v203 = vsel %vm171, %v44, 0
    %v206 = vsel %vm171, %v45, 0
    %v209 = vsel %vm171, %v46, 0
    %v212 = vsel %vm171, %v47, 0
    %v215 = vsel %vm171, %v48, 0
    %v218 = vsel %vm171, %v49, 0
    %220 = vmatprep.subr.bf16.mxu0 0
    %221 = vmatpush1.bf16.xpose.msra.mxu0 %v218
    %222 = vmatprep.subr.bf16.mxu0 0
    %223 = vmatpush1.bf16.xpose.msra.mxu0 %v215
    %224 = vmatprep.subr.bf16.mxu0 0
    %225 = vmatpush1.bf16.xpose.msra.mxu0 %v212
    %226 = vmatprep.subr.bf16.mxu0 0
    %227 = vmatpush1.bf16.xpose.msra.mxu0 %v209
    %228 = vmatprep.subr.bf16.mxu0 0
    %229 = vmatpush1.bf16.xpose.msra.mxu0 %v206
    %230 = vmatprep.subr.bf16.mxu0 0
    %231 = vmatpush1.bf16.xpose.msra.mxu0 %v203
    %232 = vmatprep.subr.bf16.mxu0 0
    %233 = vmatpush1.bf16.xpose.msra.mxu0 %v200
    %234 = vmatprep.subr.bf16.mxu0 0
    %235 = vmatpush1.bf16.xpose.msra.mxu0 %v197
    %236 = vmatprep.subr.bf16.mxu0 0
    %237 = vmatpush2.bf16.xpose.msra.mxu0 0
    %238 = vmatprep.subr.bf16.mxu0 0
    %239 = vmatpush2.bf16.xpose.msra.mxu0 0
    %240 = vmatprep.subr.bf16.mxu0 0
    %241 = vmatpush2.bf16.xpose.msra.mxu0 0
    %242 = vmatprep.subr.bf16.mxu0 0
    %243 = vmatpush2.bf16.xpose.msra.mxu0 0
    %244 = vmatprep.subr.bf16.mxu0 0
    %245 = vmatpush2.bf16.xpose.msra.mxu0 0
    %246 = vmatprep.subr.bf16.mxu0 0
    %247 = vmatpush2.bf16.xpose.msra.mxu0 0
    %248 = vmatprep.subr.bf16.mxu0 0
    %249 = vmatpush2.bf16.xpose.msra.mxu0 0
    %250 = vmatprep.subr.bf16.mxu0 0
    %251 = vmatpush2.bf16.xpose.msra.mxu0 0
    %252 = vmatprep.mubr.bf16.mxu0 0
    %253 = vmatmul.mubr.bf16.gmra.mxu0 %v173
    %v254 = vpop.f32.mrf.mxu0
    %v255 = vadd.f32 0.0, %v254
    %v256 = vpop.f32.mrf.mxu0
    %v257 = vpop.f32.mrf.mxu0
    %v258 = vadd.f32 0.0, %v257
    %v259 = vpop.f32.mrf.mxu0
    %260 = vmatprep.mubr.bf16.mxu0 0
    %261 = vmatmul.mubr.bf16.gmra.mxu0 %v176
    %v262 = vpop.f32.mrf.mxu0
    %v263 = vadd.f32 0.0, %v262
    %v264 = vpop.f32.mrf.mxu0
    %v265 = vpop.f32.mrf.mxu0
    %v266 = vadd.f32 0.0, %v265
    %v267 = vpop.f32.mrf.mxu0
    %268 = vmatprep.mubr.bf16.mxu0 0
    %269 = vmatmul.mubr.bf16.gmra.mxu0 %v179
    %v270 = vpop.f32.mrf.mxu0
    %v271 = vadd.f32 0.0, %v270
    %v272 = vpop.f32.mrf.mxu0
    %v273 = vpop.f32.mrf.mxu0
    %v274 = vadd.f32 0.0, %v273
    %v275 = vpop.f32.mrf.mxu0
    %276 = vmatprep.mubr.bf16.mxu0 0
    %277 = vmatmul.mubr.bf16.gmra.mxu0 %v182
    %v278 = vpop.f32.mrf.mxu0
    %v279 = vadd.f32 0.0, %v278
    %v280 = vpop.f32.mrf.mxu0
    %v281 = vpop.f32.mrf.mxu0
    %v282 = vadd.f32 0.0, %v281
    %v283 = vpop.f32.mrf.mxu0
    %284 = vmatprep.mubr.bf16.mxu0 0
    %285 = vmatmul.mubr.bf16.gmra.mxu0 %v185
    %v286 = vpop.f32.mrf.mxu0
    %v287 = vadd.f32 0.0, %v286
    %v288 = vpop.f32.mrf.mxu0
    %v289 = vpop.f32.mrf.mxu0
    %v290 = vadd.f32 0.0, %v289
    %v291 = vpop.f32.mrf.mxu0
    %292 = vmatprep.mubr.bf16.mxu0 0
    %293 = vmatmul.mubr.bf16.gmra.mxu0 %v188
    %v294 = vpop.f32.mrf.mxu0
    %v295 = vadd.f32 0.0, %v294
    %v296 = vpop.f32.mrf.mxu0
    %v297 = vpop.f32.mrf.mxu0
    %v298 = vadd.f32 0.0, %v297
    %v299 = vpop.f32.mrf.mxu0
    %300 = vmatprep.mubr.bf16.mxu0 0
    %301 = vmatmul.mubr.bf16.gmra.mxu0 %v191
    %v302 = vpop.f32.mrf.mxu0
    %v303 = vadd.f32 0.0, %v302
    %v304 = vpop.f32.mrf.mxu0
    %v305 = vpop.f32.mrf.mxu0
    %v306 = vadd.f32 0.0, %v305
    %v307 = vpop.f32.mrf.mxu0
    %308 = vmatprep.mubr.bf16.mxu0 0
    %309 = vmatmul.mubr.bf16.gmra.mxu0 %v194
    %v310 = vpop.f32.mrf.mxu0
    %v311 = vadd.f32 0.0, %v310
    %v312 = vpop.f32.mrf.mxu0
    %v313 = vpop.f32.mrf.mxu0
    %v314 = vadd.f32 0.0, %v313
    %v315 = vpop.f32.mrf.mxu0
    %316 = vdwg.mxu0
    %v317 = vpack.c.bf16 %v258, %v255
    %v318 = vpack.c.bf16 %v266, %v263
    %v319 = vpack.c.bf16 %v274, %v271
    %v320 = vpack.c.bf16 %v282, %v279
    %v321 = vpack.c.bf16 %v290, %v287
    %v322 = vpack.c.bf16 %v298, %v295
    %v323 = vpack.c.bf16 %v306, %v303
    %v324 = vpack.c.bf16 %v314, %v311
    %v325 = vpack.c.bf16 %v51, %v50
    %v326 = vpack.c.bf16 %v53, %v52
    %v327 = vpack.c.bf16 %v55, %v54
    %v328 = vpack.c.bf16 %v57, %v56
    %v329 = vpack.c.bf16 %v59, %v58
    %v330 = vpack.c.bf16 %v61, %v60
    %v331 = vpack.c.bf16 %v63, %v62
    %v332 = vpack.c.bf16 %v65, %v64
    %334 = vset.pattern.permute.xlu0 0
    %335 = vperm.xlu0 %334, %v325
    %v336 = vpop.permute.xlu0 %335
    %339 = vset.pattern.permute.xlu0 0
    %340 = vperm.xlu0 %339, %v326
    %v341 = vpop.permute.xlu0 %340
    %344 = vset.pattern.permute.xlu0 0
    %345 = vperm.xlu0 %344, %v327
    %v346 = vpop.permute.xlu0 %345
    %349 = vset.pattern.permute.xlu0 0
    %350 = vperm.xlu0 %349, %v328
    %v351 = vpop.permute.xlu0 %350
    %354 = vset.pattern.permute.xlu0 0
    %355 = vperm.xlu0 %354, %v329
    %v356 = vpop.permute.xlu0 %355
    %359 = vset.pattern.permute.xlu0 0
    %360 = vperm.xlu0 %359, %v330
    %v361 = vpop.permute.xlu0 %360
    %364 = vset.pattern.permute.xlu0 0
    %365 = vperm.xlu0 %364, %v331
    %v366 = vpop.permute.xlu0 %365
    %369 = vset.pattern.permute.xlu0 0
    %370 = vperm.xlu0 %369, %v332
    %v371 = vpop.permute.xlu0 %370
    %v373 = vadd.bf16 %v317, %v336
    %v374 = vadd.bf16 %v318, %v341
    %v375 = vadd.bf16 %v319, %v346
    %v376 = vadd.bf16 %v320, %v351
    %v377 = vadd.bf16 %v321, %v356
    %v378 = vadd.bf16 %v322, %v361
    %v379 = vadd.bf16 %v323, %v366
    %v380 = vadd.bf16 %v324, %v371
    %vm381 = vcmp.ge.bf16.partialorder %v373, 0
    %vm382 = vcmp.ge.bf16.partialorder %v374, 0
    %vm383 = vcmp.ge.bf16.partialorder %v375, 0
    %vm384 = vcmp.ge.bf16.partialorder %v376, 0
    %vm385 = vcmp.ge.bf16.partialorder %v377, 0
    %vm386 = vcmp.ge.bf16.partialorder %v378, 0
    %vm387 = vcmp.ge.bf16.partialorder %v379, 0
    %vm388 = vcmp.ge.bf16.partialorder %v380, 0
    %v389 = vmul.bf16 %v373, 1045249613
    %v390 = vmul.bf16 %v374, 1045249613
    %v391 = vmul.bf16 %v375, 1045249613
    %v392 = vmul.bf16 %v376, 1045249613
    %v393 = vmul.bf16 %v377, 1045249613
    %v394 = vmul.bf16 %v378, 1045249613
    %v395 = vmul.bf16 %v379, 1045249613
    %v396 = vmul.bf16 %v380, 1045249613
    %v397 = vsel %vm381, %v373, %v389
    %v398 = vsel %vm382, %v374, %v390
    %v399 = vsel %vm383, %v375, %v391
    %v400 = vsel %vm384, %v376, %v392
    %v401 = vsel %vm385, %v377, %v393
    %v402 = vsel %vm386, %v378, %v394
    %v403 = vsel %vm387, %v379, %v395
    %v404 = vsel %vm388, %v380, %v396
    %v405 = vld [vmem:[%s2] sm:$0xf]
    %v406 = vld [vmem:[%s2 + $0x4] sm:$0xf]
    %v407 = vld [vmem:[%s2 + $0x8] sm:$0xf]
    %v408 = vld [vmem:[%s2 + $0xc] sm:$0xf]
    %v409 = vld [vmem:[%s2 + $0x10] sm:$0xf]
    %v410 = vld [vmem:[%s2 + $0x14] sm:$0xf]
    %v411 = vld [vmem:[%s2 + $0x18] sm:$0xf]
    %v412 = vld [vmem:[%s2 + $0x1c] sm:$0xf]
    %v413 = vld [vmem:[%s2 + $0x20] sm:$0xf]
    %v414 = vld [vmem:[%s2 + $0x24] sm:$0xf]
    %v415 = vld [vmem:[%s2 + $0x28] sm:$0xf]
    %v416 = vld [vmem:[%s2 + $0x2c] sm:$0xf]
    %v417 = vld [vmem:[%s2 + $0x30] sm:$0xf]
    %v418 = vld [vmem:[%s2 + $0x34] sm:$0xf]
    %v419 = vld [vmem:[%s2 + $0x38] sm:$0xf]
    %v420 = vld [vmem:[%s2 + $0x3c] sm:$0xf]
    %v421 = vld [vmem:[%s2 + $0x40] sm:$0xf]
    %v422 = vld [vmem:[%s2 + $0x44] sm:$0xf]
    %v423 = vld [vmem:[%s2 + $0x48] sm:$0xf]
    %v424 = vld [vmem:[%s2 + $0x4c] sm:$0xf]
    %v425 = vld [vmem:[%s2 + $0x50] sm:$0xf]
    %v426 = vld [vmem:[%s2 + $0x54] sm:$0xf]
    %v427 = vld [vmem:[%s2 + $0x58] sm:$0xf]
    %v428 = vld [vmem:[%s2 + $0x5c] sm:$0xf]
    %v429 = vld [vmem:[%s2 + $0x60] sm:$0xf]
    %v430 = vld [vmem:[%s2 + $0x64] sm:$0xf]
    %v431 = vld [vmem:[%s2 + $0x68] sm:$0xf]
    %v432 = vld [vmem:[%s2 + $0x6c] sm:$0xf]
    %v433 = vld [vmem:[%s2 + $0x70] sm:$0xf]
    %v434 = vld [vmem:[%s2 + $0x74] sm:$0xf]
    %v435 = vld [vmem:[%s2 + $0x78] sm:$0xf]
    %v436 = vld [vmem:[%s2 + $0x7c] sm:$0xf]
    %v469 = vunpack.c.l.b16 %v405
    %v470 = vunpack.c.l.b16 %v406
    %v471 = vunpack.c.l.b16 %v407
    %v472 = vunpack.c.l.b16 %v408
    %v473 = vunpack.c.l.b16 %v409
    %v474 = vunpack.c.l.b16 %v410
    %v475 = vunpack.c.l.b16 %v411
    %v476 = vunpack.c.l.b16 %v412
    %v477 = vunpack.c.l.b16 %v413
    %v478 = vunpack.c.l.b16 %v414
    %v479 = vunpack.c.l.b16 %v415
    %v480 = vunpack.c.l.b16 %v416
    %v481 = vunpack.c.l.b16 %v417
    %v482 = vunpack.c.l.b16 %v418
    %v483 = vunpack.c.l.b16 %v419
    %v484 = vunpack.c.l.b16 %v420
    %v485 = vunpack.c.l.b16 %v421
    %v486 = vunpack.c.l.b16 %v422
    %v487 = vunpack.c.l.b16 %v423
    %v488 = vunpack.c.l.b16 %v424
    %v489 = vunpack.c.l.b16 %v425
    %v490 = vunpack.c.l.b16 %v426
    %v491 = vunpack.c.l.b16 %v427
    %v492 = vunpack.c.l.b16 %v428
    %v493 = vunpack.c.l.b16 %v429
    %v494 = vunpack.c.l.b16 %v430
    %v495 = vunpack.c.l.b16 %v431
    %v496 = vunpack.c.l.b16 %v432
    %v497 = vunpack.c.l.b16 %v433
    %v498 = vunpack.c.l.b16 %v434
    %v499 = vunpack.c.l.b16 %v435
    %v500 = vunpack.c.l.b16 %v436
    %v501 = vpack.c.b16 %v470, %v469
    %v502 = vpack.c.b16 %v472, %v471
    %v503 = vpack.c.b16 %v474, %v473
    %v504 = vpack.c.b16 %v476, %v475
    %v505 = vpack.c.b16 %v478, %v477
    %v506 = vpack.c.b16 %v480, %v479
    %v507 = vpack.c.b16 %v482, %v481
    %v508 = vpack.c.b16 %v484, %v483
    %v509 = vpack.c.b16 %v486, %v485
    %v510 = vpack.c.b16 %v488, %v487
    %v511 = vpack.c.b16 %v490, %v489
    %v512 = vpack.c.b16 %v492, %v491
    %v513 = vpack.c.b16 %v494, %v493
    %v514 = vpack.c.b16 %v496, %v495
    %v515 = vpack.c.b16 %v498, %v497
    %v516 = vpack.c.b16 %v500, %v499
    %533 = vmatprep.subr.bf16.mxu0 0
    %534 = vmatpush1.bf16.msra.mxu0 %v404
    %535 = vmatprep.subr.bf16.mxu0 0
    %536 = vmatpush1.bf16.msra.mxu0 %v403
    %537 = vmatprep.subr.bf16.mxu0 0
    %538 = vmatpush1.bf16.msra.mxu0 %v402
    %539 = vmatprep.subr.bf16.mxu0 0
    %540 = vmatpush1.bf16.msra.mxu0 %v401
    %541 = vmatprep.subr.bf16.mxu0 0
    %542 = vmatpush1.bf16.msra.mxu0 %v400
    %543 = vmatprep.subr.bf16.mxu0 0
    %544 = vmatpush1.bf16.msra.mxu0 %v399
    %545 = vmatprep.subr.bf16.mxu0 0
    %546 = vmatpush1.bf16.msra.mxu0 %v398
    %547 = vmatprep.subr.bf16.mxu0 0
    %548 = vmatpush1.bf16.msra.mxu0 %v397
    %549 = vmatprep.subr.bf16.mxu0 0
    %550 = vmatpush2.bf16.msra.mxu0 0
    %551 = vmatprep.subr.bf16.mxu0 0
    %552 = vmatpush2.bf16.msra.mxu0 0
    %553 = vmatprep.subr.bf16.mxu0 0
    %554 = vmatpush2.bf16.msra.mxu0 0
    %555 = vmatprep.subr.bf16.mxu0 0
    %556 = vmatpush2.bf16.msra.mxu0 0
    %557 = vmatprep.subr.bf16.mxu0 0
    %558 = vmatpush2.bf16.msra.mxu0 0
    %559 = vmatprep.subr.bf16.mxu0 0
    %560 = vmatpush2.bf16.msra.mxu0 0
    %561 = vmatprep.subr.bf16.mxu0 0
    %562 = vmatpush2.bf16.msra.mxu0 0
    %563 = vmatprep.subr.bf16.mxu0 0
    %564 = vmatpush2.bf16.msra.mxu0 0
    %565 = vmatprep.mubr.bf16.mxu0 0
    %566 = vmatmul.mubr.bf16.gmra.mxu0 %v501
    %v567 = vpop.f32.mrf.mxu0
    %v568 = vadd.f32 0.0, %v567
    %v569 = vpop.f32.mrf.mxu0
    %v570 = vpop.f32.mrf.mxu0
    %v571 = vadd.f32 0.0, %v570
    %v572 = vpop.f32.mrf.mxu0
    %573 = vmatprep.mubr.bf16.mxu0 0
    %574 = vmatmul.mubr.bf16.gmra.mxu0 %v502
    %v575 = vpop.f32.mrf.mxu0
    %v576 = vadd.f32 0.0, %v575
    %v577 = vpop.f32.mrf.mxu0
    %v578 = vpop.f32.mrf.mxu0
    %v579 = vadd.f32 0.0, %v578
    %v580 = vpop.f32.mrf.mxu0
    %581 = vmatprep.mubr.bf16.mxu0 0
    %582 = vmatmul.mubr.bf16.gmra.mxu0 %v503
    %v583 = vpop.f32.mrf.mxu0
    %v584 = vadd.f32 0.0, %v583
    %v585 = vpop.f32.mrf.mxu0
    %v586 = vpop.f32.mrf.mxu0
    %v587 = vadd.f32 0.0, %v586
    %v588 = vpop.f32.mrf.mxu0
    %589 = vmatprep.mubr.bf16.mxu0 0
    %590 = vmatmul.mubr.bf16.gmra.mxu0 %v504
    %v591 = vpop.f32.mrf.mxu0
    %v592 = vadd.f32 0.0, %v591
    %v593 = vpop.f32.mrf.mxu0
    %v594 = vpop.f32.mrf.mxu0
    %v595 = vadd.f32 0.0, %v594
    %v596 = vpop.f32.mrf.mxu0
    %597 = vmatprep.mubr.bf16.mxu0 0
    %598 = vmatmul.mubr.bf16.gmra.mxu0 %v505
    %v599 = vpop.f32.mrf.mxu0
    %v600 = vadd.f32 0.0, %v599
    %v601 = vpop.f32.mrf.mxu0
    %v602 = vpop.f32.mrf.mxu0
    %v603 = vadd.f32 0.0, %v602
    %v604 = vpop.f32.mrf.mxu0
    %605 = vmatprep.mubr.bf16.mxu0 0
    %606 = vmatmul.mubr.bf16.gmra.mxu0 %v506
    %v607 = vpop.f32.mrf.mxu0
    %v608 = vadd.f32 0.0, %v607
    %v609 = vpop.f32.mrf.mxu0
    %v610 = vpop.f32.mrf.mxu0
    %v611 = vadd.f32 0.0, %v610
    %v612 = vpop.f32.mrf.mxu0
    %613 = vmatprep.mubr.bf16.mxu0 0
    %614 = vmatmul.mubr.bf16.gmra.mxu0 %v507
    %v615 = vpop.f32.mrf.mxu0
    %v616 = vadd.f32 0.0, %v615
    %v617 = vpop.f32.mrf.mxu0
    %v618 = vpop.f32.mrf.mxu0
    %v619 = vadd.f32 0.0, %v618
    %v620 = vpop.f32.mrf.mxu0
    %621 = vmatprep.mubr.bf16.mxu0 0
    %622 = vmatmul.mubr.bf16.gmra.mxu0 %v508
    %v623 = vpop.f32.mrf.mxu0
    %v624 = vadd.f32 0.0, %v623
    %v625 = vpop.f32.mrf.mxu0
    %v626 = vpop.f32.mrf.mxu0
    %v627 = vadd.f32 0.0, %v626
    %v628 = vpop.f32.mrf.mxu0
    %629 = vmatprep.mubr.bf16.mxu0 0
    %630 = vmatmul.mubr.bf16.gmra.mxu0 %v509
    %v631 = vpop.f32.mrf.mxu0
    %v632 = vadd.f32 0.0, %v631
    %v633 = vpop.f32.mrf.mxu0
    %v634 = vpop.f32.mrf.mxu0
    %v635 = vadd.f32 0.0, %v634
    %v636 = vpop.f32.mrf.mxu0
    %637 = vmatprep.mubr.bf16.mxu0 0
    %638 = vmatmul.mubr.bf16.gmra.mxu0 %v510
    %v639 = vpop.f32.mrf.mxu0
    %v640 = vadd.f32 0.0, %v639
    %v641 = vpop.f32.mrf.mxu0
    %v642 = vpop.f32.mrf.mxu0
    %v643 = vadd.f32 0.0, %v642
    %v644 = vpop.f32.mrf.mxu0
    %645 = vmatprep.mubr.bf16.mxu0 0
    %646 = vmatmul.mubr.bf16.gmra.mxu0 %v511
    %v647 = vpop.f32.mrf.mxu0
    %v648 = vadd.f32 0.0, %v647
    %v649 = vpop.f32.mrf.mxu0
    %v650 = vpop.f32.mrf.mxu0
    %v651 = vadd.f32 0.0, %v650
    %v652 = vpop.f32.mrf.mxu0
    %653 = vmatprep.mubr.bf16.mxu0 0
    %654 = vmatmul.mubr.bf16.gmra.mxu0 %v512
    %v655 = vpop.f32.mrf.mxu0
    %v656 = vadd.f32 0.0, %v655
    %v657 = vpop.f32.mrf.mxu0
    %v658 = vpop.f32.mrf.mxu0
    %v659 = vadd.f32 0.0, %v658
    %v660 = vpop.f32.mrf.mxu0
    %661 = vmatprep.mubr.bf16.mxu0 0
    %662 = vmatmul.mubr.bf16.gmra.mxu0 %v513
    %v663 = vpop.f32.mrf.mxu0
    %v664 = vadd.f32 0.0, %v663
    %v665 = vpop.f32.mrf.mxu0
    %v666 = vpop.f32.mrf.mxu0
    %v667 = vadd.f32 0.0, %v666
    %v668 = vpop.f32.mrf.mxu0
    %669 = vmatprep.mubr.bf16.mxu0 0
    %670 = vmatmul.mubr.bf16.gmra.mxu0 %v514
    %v671 = vpop.f32.mrf.mxu0
    %v672 = vadd.f32 0.0, %v671
    %v673 = vpop.f32.mrf.mxu0
    %v674 = vpop.f32.mrf.mxu0
    %v675 = vadd.f32 0.0, %v674
    %v676 = vpop.f32.mrf.mxu0
    %677 = vmatprep.mubr.bf16.mxu0 0
    %678 = vmatmul.mubr.bf16.gmra.mxu0 %v515
    %v679 = vpop.f32.mrf.mxu0
    %v680 = vadd.f32 0.0, %v679
    %v681 = vpop.f32.mrf.mxu0
    %v682 = vpop.f32.mrf.mxu0
    %v683 = vadd.f32 0.0, %v682
    %v684 = vpop.f32.mrf.mxu0
    %685 = vmatprep.mubr.bf16.mxu0 0
    %686 = vmatmul.mubr.bf16.gmra.mxu0 %v516
    %v687 = vpop.f32.mrf.mxu0
    %v688 = vadd.f32 0.0, %v687
    %v689 = vpop.f32.mrf.mxu0
    %v690 = vpop.f32.mrf.mxu0
    %v691 = vadd.f32 0.0, %v690
    %v692 = vpop.f32.mrf.mxu0
    %693 = vdwg.mxu0
    %v694 = vpack.c.bf16 %v571, %v568
    %v695 = vpack.c.bf16 %v579, %v576
    %v696 = vpack.c.bf16 %v587, %v584
    %v697 = vpack.c.bf16 %v595, %v592
    %v698 = vpack.c.bf16 %v603, %v600
    %v699 = vpack.c.bf16 %v611, %v608
    %v700 = vpack.c.bf16 %v619, %v616
    %v701 = vpack.c.bf16 %v627, %v624
    %v702 = vpack.c.bf16 %v635, %v632
    %v703 = vpack.c.bf16 %v643, %v640
    %v704 = vpack.c.bf16 %v651, %v648
    %v705 = vpack.c.bf16 %v659, %v656
    %v706 = vpack.c.bf16 %v667, %v664
    %v707 = vpack.c.bf16 %v675, %v672
    %v708 = vpack.c.bf16 %v683, %v680
    %v709 = vpack.c.bf16 %v691, %v688
    %v710 = vpack.c.bf16 %v67, %v66
    %v711 = vpack.c.bf16 %v69, %v68
    %v712 = vpack.c.bf16 %v71, %v70
    %v713 = vpack.c.bf16 %v73, %v72
    %v714 = vpack.c.bf16 %v75, %v74
    %v715 = vpack.c.bf16 %v77, %v76
    %v716 = vpack.c.bf16 %v79, %v78
    %v717 = vpack.c.bf16 %v81, %v80
    %v718 = vpack.c.bf16 %v83, %v82
    %v719 = vpack.c.bf16 %v85, %v84
    %v720 = vpack.c.bf16 %v87, %v86
    %v721 = vpack.c.bf16 %v89, %v88
    %v722 = vpack.c.bf16 %v91, %v90
    %v723 = vpack.c.bf16 %v93, %v92
    %v724 = vpack.c.bf16 %v95, %v94
    %v725 = vpack.c.bf16 %v97, %v96
    %727 = vset.pattern.permute.xlu0 0
    %728 = vperm.xlu0 %727, %v710
    %v729 = vpop.permute.xlu0 %728
    %732 = vset.pattern.permute.xlu0 0
    %733 = vperm.xlu0 %732, %v711
    %v734 = vpop.permute.xlu0 %733
    %737 = vset.pattern.permute.xlu0 0
    %738 = vperm.xlu0 %737, %v712
    %v739 = vpop.permute.xlu0 %738
    %742 = vset.pattern.permute.xlu0 0
    %743 = vperm.xlu0 %742, %v713
    %v744 = vpop.permute.xlu0 %743
    %747 = vset.pattern.permute.xlu0 0
    %748 = vperm.xlu0 %747, %v714
    %v749 = vpop.permute.xlu0 %748
    %752 = vset.pattern.permute.xlu0 0
    %753 = vperm.xlu0 %752, %v715
    %v754 = vpop.permute.xlu0 %753
    %757 = vset.pattern.permute.xlu0 0
    %758 = vperm.xlu0 %757, %v716
    %v759 = vpop.permute.xlu0 %758
    %762 = vset.pattern.permute.xlu0 0
    %763 = vperm.xlu0 %762, %v717
    %v764 = vpop.permute.xlu0 %763
    %767 = vset.pattern.permute.xlu0 0
    %768 = vperm.xlu0 %767, %v718
    %v769 = vpop.permute.xlu0 %768
    %772 = vset.pattern.permute.xlu0 0
    %773 = vperm.xlu0 %772, %v719
    %v774 = vpop.permute.xlu0 %773
    %777 = vset.pattern.permute.xlu0 0
    %778 = vperm.xlu0 %777, %v720
    %v779 = vpop.permute.xlu0 %778
    %782 = vset.pattern.permute.xlu0 0
    %783 = vperm.xlu0 %782, %v721
    %v784 = vpop.permute.xlu0 %783
    %787 = vset.pattern.permute.xlu0 0
    %788 = vperm.xlu0 %787, %v722
    %v789 = vpop.permute.xlu0 %788
    %792 = vset.pattern.permute.xlu0 0
    %793 = vperm.xlu0 %792, %v723
    %v794 = vpop.permute.xlu0 %793
    %797 = vset.pattern.permute.xlu0 0
    %798 = vperm.xlu0 %797, %v724
    %v799 = vpop.permute.xlu0 %798
    %802 = vset.pattern.permute.xlu0 0
    %803 = vperm.xlu0 %802, %v725
    %v804 = vpop.permute.xlu0 %803
    %v806 = vadd.bf16 %v694, %v729
    %v807 = vadd.bf16 %v695, %v734
    %v808 = vadd.bf16 %v696, %v739
    %v809 = vadd.bf16 %v697, %v744
    %v810 = vadd.bf16 %v698, %v749
    %v811 = vadd.bf16 %v699, %v754
    %v812 = vadd.bf16 %v700, %v759
    %v813 = vadd.bf16 %v701, %v764
    %v814 = vadd.bf16 %v702, %v769
    %v815 = vadd.bf16 %v703, %v774
    %v816 = vadd.bf16 %v704, %v779
    %v817 = vadd.bf16 %v705, %v784
    %v818 = vadd.bf16 %v706, %v789
    %v819 = vadd.bf16 %v707, %v794
    %v820 = vadd.bf16 %v708, %v799
    %v821 = vadd.bf16 %v709, %v804
    %vm822 = vcmp.ge.bf16.partialorder %v806, 0
    %vm823 = vcmp.ge.bf16.partialorder %v807, 0
    %vm824 = vcmp.ge.bf16.partialorder %v808, 0
    %vm825 = vcmp.ge.bf16.partialorder %v809, 0
    %vm826 = vcmp.ge.bf16.partialorder %v810, 0
    %vm827 = vcmp.ge.bf16.partialorder %v811, 0
    %vm828 = vcmp.ge.bf16.partialorder %v812, 0
    %vm829 = vcmp.ge.bf16.partialorder %v813, 0
    %vm830 = vcmp.ge.bf16.partialorder %v814, 0
    %vm831 = vcmp.ge.bf16.partialorder %v815, 0
    %vm832 = vcmp.ge.bf16.partialorder %v816, 0
    %vm833 = vcmp.ge.bf16.partialorder %v817, 0
    %vm834 = vcmp.ge.bf16.partialorder %v818, 0
    %vm835 = vcmp.ge.bf16.partialorder %v819, 0
    %vm836 = vcmp.ge.bf16.partialorder %v820, 0
    %vm837 = vcmp.ge.bf16.partialorder %v821, 0
    %v838 = vmul.bf16 %v806, 1045249613
    %v839 = vmul.bf16 %v807, 1045249613
    %v840 = vmul.bf16 %v808, 1045249613
    %v841 = vmul.bf16 %v809, 1045249613
    %v842 = vmul.bf16 %v810, 1045249613
    %v843 = vmul.bf16 %v811, 1045249613
    %v844 = vmul.bf16 %v812, 1045249613
    %v845 = vmul.bf16 %v813, 1045249613
    %v846 = vmul.bf16 %v814, 1045249613
    %v847 = vmul.bf16 %v815, 1045249613
    %v848 = vmul.bf16 %v816, 1045249613
    %v849 = vmul.bf16 %v817, 1045249613
    %v850 = vmul.bf16 %v818, 1045249613
    %v851 = vmul.bf16 %v819, 1045249613
    %v852 = vmul.bf16 %v820, 1045249613
    %v853 = vmul.bf16 %v821, 1045249613
    %v854 = vsel %vm822, %v806, %v838
    %v855 = vsel %vm823, %v807, %v839
    %v856 = vsel %vm824, %v808, %v840
    %v857 = vsel %vm825, %v809, %v841
    %v858 = vsel %vm826, %v810, %v842
    %v859 = vsel %vm827, %v811, %v843
    %v860 = vsel %vm828, %v812, %v844
    %v861 = vsel %vm829, %v813, %v845
    %v862 = vsel %vm830, %v814, %v846
    %v863 = vsel %vm831, %v815, %v847
    %v864 = vsel %vm832, %v816, %v848
    %v865 = vsel %vm833, %v817, %v849
    %v866 = vsel %vm834, %v818, %v850
    %v867 = vsel %vm835, %v819, %v851
    %v868 = vsel %vm836, %v820, %v852
    %v869 = vsel %vm837, %v821, %v853
    %v870 = vld [vmem:[%s3] sm:$0xff]
    %v871 = vld [vmem:[%s3 + $0x8] sm:$0xff]
    %v872 = vld [vmem:[%s3 + $0x10] sm:$0xff]
    %v873 = vld [vmem:[%s3 + $0x18] sm:$0xff]
    %v874 = vld [vmem:[%s3 + $0x20] sm:$0xff]
    %v875 = vld [vmem:[%s3 + $0x28] sm:$0xff]
    %v876 = vld [vmem:[%s3 + $0x30] sm:$0xff]
    %v877 = vld [vmem:[%s3 + $0x38] sm:$0xff]
    %v878 = vld [vmem:[%s3 + $0x40] sm:$0xff]
    %v879 = vld [vmem:[%s3 + $0x48] sm:$0xff]
    %v880 = vld [vmem:[%s3 + $0x50] sm:$0xff]
    %v881 = vld [vmem:[%s3 + $0x58] sm:$0xff]
    %v882 = vld [vmem:[%s3 + $0x60] sm:$0xff]
    %v883 = vld [vmem:[%s3 + $0x68] sm:$0xff]
    %v884 = vld [vmem:[%s3 + $0x70] sm:$0xff]
    %v885 = vld [vmem:[%s3 + $0x78] sm:$0xff]
    %v902 = vunpack.c.l.b16 %v870
    %v903 = vunpack.c.h.b16 %v870
    %v904 = vunpack.c.l.b16 %v871
    %v905 = vunpack.c.h.b16 %v871
    %v906 = vunpack.c.l.b16 %v872
    %v907 = vunpack.c.h.b16 %v872
    %v908 = vunpack.c.l.b16 %v873
    %v909 = vunpack.c.h.b16 %v873
    %v910 = vunpack.c.l.b16 %v874
    %v911 = vunpack.c.h.b16 %v874
    %v912 = vunpack.c.l.b16 %v875
    %v913 = vunpack.c.h.b16 %v875
    %v914 = vunpack.c.l.b16 %v876
    %v915 = vunpack.c.h.b16 %v876
    %v916 = vunpack.c.l.b16 %v877
    %v917 = vunpack.c.h.b16 %v877
    %v918 = vunpack.c.l.b16 %v878
    %v919 = vunpack.c.h.b16 %v878
    %v920 = vunpack.c.l.b16 %v879
    %v921 = vunpack.c.h.b16 %v879
    %v922 = vunpack.c.l.b16 %v880
    %v923 = vunpack.c.h.b16 %v880
    %v924 = vunpack.c.l.b16 %v881
    %v925 = vunpack.c.h.b16 %v881
    %v926 = vunpack.c.l.b16 %v882
    %v927 = vunpack.c.h.b16 %v882
    %v928 = vunpack.c.l.b16 %v883
    %v929 = vunpack.c.h.b16 %v883
    %v930 = vunpack.c.l.b16 %v884
    %v931 = vunpack.c.h.b16 %v884
    %v932 = vunpack.c.l.b16 %v885
    %v933 = vunpack.c.h.b16 %v885
    %v934 = vpack.c.b16 %v904, %v902
    %v935 = vpack.c.b16 %v905, %v903
    %v936 = vpack.c.b16 %v908, %v906
    %v937 = vpack.c.b16 %v909, %v907
    %v938 = vpack.c.b16 %v912, %v910
    %v939 = vpack.c.b16 %v913, %v911
    %v940 = vpack.c.b16 %v916, %v914
    %v941 = vpack.c.b16 %v917, %v915
    %v942 = vpack.c.b16 %v920, %v918
    %v943 = vpack.c.b16 %v921, %v919
    %v944 = vpack.c.b16 %v924, %v922
    %v945 = vpack.c.b16 %v925, %v923
    %v946 = vpack.c.b16 %v928, %v926
    %v947 = vpack.c.b16 %v929, %v927
    %v948 = vpack.c.b16 %v932, %v930
    %v949 = vpack.c.b16 %v933, %v931
    %966 = vmatprep.subr.bf16.mxu0 0
    %967 = vmatpush1.bf16.msra.mxu0 %v861
    %968 = vmatprep.subr.bf16.mxu0 0
    %969 = vmatpush1.bf16.msra.mxu0 %v860
    %970 = vmatprep.subr.bf16.mxu0 0
    %971 = vmatpush1.bf16.msra.mxu0 %v859
    %972 = vmatprep.subr.bf16.mxu0 0
    %973 = vmatpush1.bf16.msra.mxu0 %v858
    %974 = vmatprep.subr.bf16.mxu0 0
    %975 = vmatpush1.bf16.msra.mxu0 %v857
    %976 = vmatprep.subr.bf16.mxu0 0
    %977 = vmatpush1.bf16.msra.mxu0 %v856
    %978 = vmatprep.subr.bf16.mxu0 0
    %979 = vmatpush1.bf16.msra.mxu0 %v855
    %980 = vmatprep.subr.bf16.mxu0 0
    %981 = vmatpush1.bf16.msra.mxu0 %v854
    %982 = vmatprep.subr.bf16.mxu0 0
    %983 = vmatpush2.bf16.msra.mxu0 %v869
    %984 = vmatprep.subr.bf16.mxu0 0
    %985 = vmatpush2.bf16.msra.mxu0 %v868
    %986 = vmatprep.subr.bf16.mxu0 0
    %987 = vmatpush2.bf16.msra.mxu0 %v867
    %988 = vmatprep.subr.bf16.mxu0 0
    %989 = vmatpush2.bf16.msra.mxu0 %v866
    %990 = vmatprep.subr.bf16.mxu0 0
    %991 = vmatpush2.bf16.msra.mxu0 %v865
    %992 = vmatprep.subr.bf16.mxu0 0
    %993 = vmatpush2.bf16.msra.mxu0 %v864
    %994 = vmatprep.subr.bf16.mxu0 0
    %995 = vmatpush2.bf16.msra.mxu0 %v863
    %996 = vmatprep.subr.bf16.mxu0 0
    %997 = vmatpush2.bf16.msra.mxu0 %v862
    %998 = vmatprep.mubr.bf16.mxu0 %v935
    %999 = vmatmul.mubr.bf16.gmra.mxu0 %v934
    %v1000 = vpop.f32.mrf.mxu0
    %v1001 = vadd.f32 0.0, %v1000
    %v1002 = vpop.f32.mrf.mxu0
    %v1003 = vpop.f32.mrf.mxu0
    %v1004 = vadd.f32 0.0, %v1003
    %v1005 = vpop.f32.mrf.mxu0
    %1006 = vmatprep.mubr.bf16.mxu0 %v937
    %1007 = vmatmul.mubr.bf16.gmra.mxu0 %v936
    %v1008 = vpop.f32.mrf.mxu0
    %v1009 = vadd.f32 0.0, %v1008
    %v1010 = vpop.f32.mrf.mxu0
    %v1011 = vpop.f32.mrf.mxu0
    %v1012 = vadd.f32 0.0, %v1011
    %v1013 = vpop.f32.mrf.mxu0
    %1014 = vmatprep.mubr.bf16.mxu0 %v939
    %1015 = vmatmul.mubr.bf16.gmra.mxu0 %v938
    %v1016 = vpop.f32.mrf.mxu0
    %v1017 = vadd.f32 0.0, %v1016
    %v1018 = vpop.f32.mrf.mxu0
    %v1019 = vpop.f32.mrf.mxu0
    %v1020 = vadd.f32 0.0, %v1019
    %v1021 = vpop.f32.mrf.mxu0
    %1022 = vmatprep.mubr.bf16.mxu0 %v941
    %1023 = vmatmul.mubr.bf16.gmra.mxu0 %v940
    %v1024 = vpop.f32.mrf.mxu0
    %v1025 = vadd.f32 0.0, %v1024
    %v1026 = vpop.f32.mrf.mxu0
    %v1027 = vpop.f32.mrf.mxu0
    %v1028 = vadd.f32 0.0, %v1027
    %v1029 = vpop.f32.mrf.mxu0
    %1030 = vmatprep.mubr.bf16.mxu0 %v943
    %1031 = vmatmul.mubr.bf16.gmra.mxu0 %v942
    %v1032 = vpop.f32.mrf.mxu0
    %v1033 = vadd.f32 0.0, %v1032
    %v1034 = vpop.f32.mrf.mxu0
    %v1035 = vpop.f32.mrf.mxu0
    %v1036 = vadd.f32 0.0, %v1035
    %v1037 = vpop.f32.mrf.mxu0
    %1038 = vmatprep.mubr.bf16.mxu0 %v945
    %1039 = vmatmul.mubr.bf16.gmra.mxu0 %v944
    %v1040 = vpop.f32.mrf.mxu0
    %v1041 = vadd.f32 0.0, %v1040
    %v1042 = vpop.f32.mrf.mxu0
    %v1043 = vpop.f32.mrf.mxu0
    %v1044 = vadd.f32 0.0, %v1043
    %v1045 = vpop.f32.mrf.mxu0
    %1046 = vmatprep.mubr.bf16.mxu0 %v947
    %1047 = vmatmul.mubr.bf16.gmra.mxu0 %v946
    %v1048 = vpop.f32.mrf.mxu0
    %v1049 = vadd.f32 0.0, %v1048
    %v1050 = vpop.f32.mrf.mxu0
    %v1051 = vpop.f32.mrf.mxu0
    %v1052 = vadd.f32 0.0, %v1051
    %v1053 = vpop.f32.mrf.mxu0
    %1054 = vmatprep.mubr.bf16.mxu0 %v949
    %1055 = vmatmul.mubr.bf16.gmra.mxu0 %v948
    %v1056 = vpop.f32.mrf.mxu0
    %v1057 = vadd.f32 0.0, %v1056
    %v1058 = vpop.f32.mrf.mxu0
    %v1059 = vpop.f32.mrf.mxu0
    %v1060 = vadd.f32 0.0, %v1059
    %v1061 = vpop.f32.mrf.mxu0
    %1062 = vdwg.mxu0
    %v1063 = vpack.c.bf16 %v1004, %v1001
    %v1064 = vpack.c.bf16 %v1012, %v1009
    %v1065 = vpack.c.bf16 %v1020, %v1017
    %v1066 = vpack.c.bf16 %v1028, %v1025
    %v1067 = vpack.c.bf16 %v1036, %v1033
    %v1068 = vpack.c.bf16 %v1044, %v1041
    %v1069 = vpack.c.bf16 %v1052, %v1049
    %v1070 = vpack.c.bf16 %v1060, %v1057
    %v1071 = vpack.c.bf16 %v99, %v98
    %v1072 = vpack.c.bf16 %v101, %v100
    %v1073 = vpack.c.bf16 %v103, %v102
    %v1074 = vpack.c.bf16 %v105, %v104
    %v1075 = vpack.c.bf16 %v107, %v106
    %v1076 = vpack.c.bf16 %v109, %v108
    %v1077 = vpack.c.bf16 %v111, %v110
    %v1078 = vpack.c.bf16 %v113, %v112
    %1080 = vset.pattern.permute.xlu0 0
    %1081 = vperm.xlu0 %1080, %v1071
    %v1082 = vpop.permute.xlu0 %1081
    %1085 = vset.pattern.permute.xlu0 0
    %1086 = vperm.xlu0 %1085, %v1072
    %v1087 = vpop.permute.xlu0 %1086
    %1090 = vset.pattern.permute.xlu0 0
    %1091 = vperm.xlu0 %1090, %v1073
    %v1092 = vpop.permute.xlu0 %1091
    %1095 = vset.pattern.permute.xlu0 0
    %1096 = vperm.xlu0 %1095, %v1074
    %v1097 = vpop.permute.xlu0 %1096
    %1100 = vset.pattern.permute.xlu0 0
    %1101 = vperm.xlu0 %1100, %v1075
    %v1102 = vpop.permute.xlu0 %1101
    %1105 = vset.pattern.permute.xlu0 0
    %1106 = vperm.xlu0 %1105, %v1076
    %v1107 = vpop.permute.xlu0 %1106
    %1110 = vset.pattern.permute.xlu0 0
    %1111 = vperm.xlu0 %1110, %v1077
    %v1112 = vpop.permute.xlu0 %1111
    %1115 = vset.pattern.permute.xlu0 0
    %1116 = vperm.xlu0 %1115, %v1078
    %v1117 = vpop.permute.xlu0 %1116
    %v1119 = vadd.bf16 %v1063, %v1082
    %v1120 = vadd.bf16 %v1064, %v1087
    %v1121 = vadd.bf16 %v1065, %v1092
    %v1122 = vadd.bf16 %v1066, %v1097
    %v1123 = vadd.bf16 %v1067, %v1102
    %v1124 = vadd.bf16 %v1068, %v1107
    %v1125 = vadd.bf16 %v1069, %v1112
    %v1126 = vadd.bf16 %v1070, %v1117
    %vm1127 = vcmp.ge.bf16.partialorder %v1119, 0
    %vm1128 = vcmp.ge.bf16.partialorder %v1120, 0
    %vm1129 = vcmp.ge.bf16.partialorder %v1121, 0
    %vm1130 = vcmp.ge.bf16.partialorder %v1122, 0
    %vm1131 = vcmp.ge.bf16.partialorder %v1123, 0
    %vm1132 = vcmp.ge.bf16.partialorder %v1124, 0
    %vm1133 = vcmp.ge.bf16.partialorder %v1125, 0
    %vm1134 = vcmp.ge.bf16.partialorder %v1126, 0
    %v1135 = vmul.bf16 %v1119, 1045249613
    %v1136 = vmul.bf16 %v1120, 1045249613
    %v1137 = vmul.bf16 %v1121, 1045249613
    %v1138 = vmul.bf16 %v1122, 1045249613
    %v1139 = vmul.bf16 %v1123, 1045249613
    %v1140 = vmul.bf16 %v1124, 1045249613
    %v1141 = vmul.bf16 %v1125, 1045249613
    %v1142 = vmul.bf16 %v1126, 1045249613
    %v1143 = vsel %vm1127, %v1119, %v1135
    %v1144 = vsel %vm1128, %v1120, %v1136
    %v1145 = vsel %vm1129, %v1121, %v1137
    %v1146 = vsel %vm1130, %v1122, %v1138
    %v1147 = vsel %vm1131, %v1123, %v1139
    %v1148 = vsel %vm1132, %v1124, %v1140
    %v1149 = vsel %vm1133, %v1125, %v1141
    %v1150 = vsel %vm1134, %v1126, %v1142
    %v1151 = vld [vmem:[%s4] sm:$0x1]
    %1153 = vset.pattern.permute.xlu0 0
    %1154 = vperm.xlu0 %1153, %v114
    %v1155 = vpop.permute.xlu0 %1154
    %1157 = vmatprep.subr.bf16.mxu0 0
    %1158 = vmatpush1.bf16.msra.mxu0 %v1150
    %1159 = vmatprep.subr.bf16.mxu0 0
    %1160 = vmatpush1.bf16.msra.mxu0 %v1149
    %1161 = vmatprep.subr.bf16.mxu0 0
    %1162 = vmatpush1.bf16.msra.mxu0 %v1148
    %1163 = vmatprep.subr.bf16.mxu0 0
    %1164 = vmatpush1.bf16.msra.mxu0 %v1147
    %1165 = vmatprep.subr.bf16.mxu0 0
    %1166 = vmatpush1.bf16.msra.mxu0 %v1146
    %1167 = vmatprep.subr.bf16.mxu0 0
    %1168 = vmatpush1.bf16.msra.mxu0 %v1145
    %1169 = vmatprep.subr.bf16.mxu0 0
    %1170 = vmatpush1.bf16.msra.mxu0 %v1144
    %1171 = vmatprep.subr.bf16.mxu0 0
    %1172 = vmatpush1.bf16.msra.mxu0 %v1143
    %1173 = vmatprep.subr.bf16.mxu0 0
    %1174 = vmatpush2.bf16.msra.mxu0 0
    %1175 = vmatprep.subr.bf16.mxu0 0
    %1176 = vmatpush2.bf16.msra.mxu0 0
    %1177 = vmatprep.subr.bf16.mxu0 0
    %1178 = vmatpush2.bf16.msra.mxu0 0
    %1179 = vmatprep.subr.bf16.mxu0 0
    %1180 = vmatpush2.bf16.msra.mxu0 0
    %1181 = vmatprep.subr.bf16.mxu0 0
    %1182 = vmatpush2.bf16.msra.mxu0 0
    %1183 = vmatprep.subr.bf16.mxu0 0
    %1184 = vmatpush2.bf16.msra.mxu0 0
    %1185 = vmatprep.subr.bf16.mxu0 0
    %1186 = vmatpush2.bf16.msra.mxu0 0
    %1187 = vmatprep.subr.bf16.mxu0 0
    %1188 = vmatpush2.bf16.msra.mxu0 0
    %1189 = vmatprep.mubr.bf16.mxu0 0
    %1190 = vmatmul.mubr.bf16.gmra.mxu0 %v1151
    %v1191 = vpop.f32.mrf.mxu0
    %v1192 = vadd.f32 %v1155, %v1191
    %v1193 = vpop.f32.mrf.mxu0
    %v1194 = vpop.f32.mrf.mxu0
    %v1195 = vpop.f32.mrf.mxu0
    %1196 = vdwg.mxu0
    %v1197 = vxor.u32 %v1192, 2147483648
    %v1198 = vmul.f32 %v1197, 1.442695
    %v1199 = vpow.pop %v1198
    %v1200 = vadd.f32 %v1199, 1.0
    %v1201 = vrcp.pop %v1200
    %v1202 = vmul.f32 1.0, %v1201
    %1203 = vst [vmem:[#allocation2] sm:$0x1] %v1202
    // Predicated region
    $region26: #{tpu_custom_call.1} parent=1 // pred_check
      _
    $region27: #{tpu_custom_call.1} parent=1 // pred_check_branch
      %1205 = sbr.rel (0) target = $region29
    $region28: #{tpu_custom_call.1} parent=1 // pred_region
      %s1207 = ssub.s32 16, 16
      %1208 = vsyncadd [#allocation3], %s1207
      %s1210 = sshll.u32 [#allocation2], 4
      %s1211 = int_to_ptr.vmem [resolvable:$true] %s1210
      %1213 = dma.vmem_to_hbm [thread:$0]  %s1211, 16, %s6, [#allocation3]
    $region29: #{tpu_custom_call.1} parent=1 // pred_fallthru
      _
    // Predicated region
    $region30: #{tpu_custom_call.1} parent=1 // pred_check
      _
    $region31: #{tpu_custom_call.1} parent=1 // pred_check_branch
      %1215 = sbr.rel (0) target = $region33
    $region32: #{tpu_custom_call.1} parent=1 // pred_region
      %1216 = dma.done [#allocation3], 16
    $region33: #{tpu_custom_call.1} parent=1 // pred_fallthru
      _
    %1217 = vsyncpa [#allocation3], 1

</llo_original>
